<compile_context>
chip_gen: v6e
topology: v6e:2x2x1
jax: 0.10.0
libtpu: 0.0.40
codegen_flags: <defaults>
</compile_context>

<pallas_src>
import functools

import jax
import jax.numpy as jnp
from jax.experimental import pallas as pl
from jax.experimental.pallas import tpu as pltpu

# In the PyTorch module, num_classes is drawn by class_sampler_f(2, num_classes)
# (either 2 or a uniform int).  For a deterministic synthetic kernel we fix it.
NUM_CLASSES = 5


def _round_up(n, m):
    return ((n + m - 1) // m) * m


def _multinomial_kernel(x_ref, u_ref, out_ref, *, num_classes):
    # x_ref:   VMEM (C, TR) float32   -- classes on sublanes, rows on lanes
    # u_ref:   VMEM (1, TR) float32   -- one uniform in [0, 1) per row
    # out_ref: VMEM (1, TR) int32     -- sampled class index per row
    xc = x_ref[...]                                             # (C, TR)
    xc = jnp.where(jnp.isnan(xc), jnp.float32(1e-5), xc)        # x[isnan(x)] = 1e-5

    # Unnormalized categorical weights: (1e-5 + sigmoid(x))**3 (full-lane VPU/EUP work).
    base = jnp.float32(1e-5) + jax.nn.sigmoid(xc)
    w = base * base * base                                      # (C, TR)

    # Inclusive prefix sums along the (tiny, static) class axis: C-1 full-lane adds.
    cumsums = []
    acc = w[0:1, :]                                             # (1, TR)
    cumsums.append(acc)
    for c in range(1, num_classes):
        acc = acc + w[c:c + 1, :]
        cumsums.append(acc)
    total = cumsums[-1]                                         # (1, TR) == exact last cumsum

    # Inverse-CDF sampling: thresh = u * total < total, so idx <= num_classes - 1 always.
    thresh = u_ref[...] * total                                 # (1, TR)
    idx = jnp.zeros(out_ref.shape, dtype=jnp.int32)
    for c in range(num_classes - 1):                            # cs[C-1] < thresh is never true
        idx = idx + (cumsums[c] < thresh).astype(jnp.int32)
    out_ref[...] = idx


def multiclass_multi_node_forward(x, seed=0, num_classes=NUM_CLASSES):
    """Forward pass of MulticlassMultiNode for 3-D x of shape (S, B, F)."""
    if x.ndim == 2:
        # TODO(synk): 2-D branch delegates to MulticlassValue which depends on
        # randomize_classes (not provided in the source); not implemented.
        raise NotImplementedError("2-D input path (MulticlassValue) not implemented")

    S, B, F = x.shape
    C = num_classes
    R = S * B

    # Slice only the needed feature columns, then transpose to (C, R): rows on lanes.
    xt = x[:, :, :C].reshape(R, C).astype(jnp.float32).T        # (C, R)

    # Row tiling: TR multiple of 128 (full lane tiles, lane-dense output), Rp = padded rows.
    TR = min(1024, _round_up(R, 128))
    Rp = _round_up(R, TR)
    if Rp != R:
        xt = jnp.pad(xt, ((0, 0), (0, Rp - R)))                 # padded rows discarded later

    # One uniform per row, generated outside the kernel (portable, deterministic).
    u = jax.random.uniform(jax.random.PRNGKey(seed), (1, Rp), dtype=jnp.float32)

    kernel = functools.partial(_multinomial_kernel, num_classes=C)
    num_tiles = Rp // TR

    out = pl.pallas_call(
        kernel,
        out_shape=jax.ShapeDtypeStruct((1, Rp), jnp.int32),
        grid=(num_tiles,),
        in_specs=[
            pl.BlockSpec((C, TR), lambda i: (0, i)),
            pl.BlockSpec((1, TR), lambda i: (0, i)),
        ],
        out_specs=pl.BlockSpec((1, TR), lambda i: (0, i)),
        compiler_params=pltpu.CompilerParams(
            dimension_semantics=("parallel",),
            vmem_limit_bytes=16 * 1024 * 1024,
        ),
        cost_estimate=pl.CostEstimate(
            flops=8 * Rp * C,
            transcendentals=Rp * C,
            bytes_accessed=Rp * C * 4 + Rp * 4 + Rp * 4,
        ),
    )(xt, u)

    return out[0, :R].reshape(S, B)


if __name__ == "__main__":
    key = jax.random.PRNGKey(0)
    k1, k2 = jax.random.split(key)

    S, B, F = 8, 4, 32
    x = jax.random.normal(k1, (S, B, F), dtype=jnp.float32)
    # Sprinkle NaNs (inside the first num_classes columns) to exercise the nan path.
    x = x.at[0, 0, 0].set(jnp.nan).at[3, 2, 1].set(jnp.nan)

    # Deterministic init of the module's (unused-in-3D-path) parameter for fidelity
    # with __init__: classes = randn(num_classes - 1)
    classes_param = jax.random.normal(k2, (NUM_CLASSES - 1,), dtype=jnp.float32)

    d = multiclass_multi_node_forward(x, seed=0)
    d = jax.block_until_ready(d)

    assert d.shape == (S, B), d.shape
    assert d.dtype == jnp.int32
    assert bool(jnp.all((d >= 0) & (d < NUM_CLASSES)))
    print("KERNEL_OK")
</pallas_src>

<mosaic_0001>
module attributes {stable_mosaic.version = 11 : i64} {
  func.func @_multinomial_kernel(%arg0: i32, %arg1: memref<5x128xf32, #tpu.memory_space<vmem>>, %arg2: memref<1x128xf32, #tpu.memory_space<vmem>>, %arg3: memref<1x128xi32, #tpu.memory_space<vmem>>) attributes {dimension_semantics = [#tpu.dimension_semantics<parallel>], iteration_bounds = array<i64: 1>, scalar_prefetch = 0 : i64, scratch_operands = 0 : i64, tpu.core_type = #tpu.core_type<tc>, window_params = [{transform_indices = @transform_0, window_bounds = array<i64: 5, 128>}, {transform_indices = @transform_1, window_bounds = array<i64: 1, 128>}, {transform_indices = @transform_2, window_bounds = array<i64: 1, 128>}]} {
    %c0 = arith.constant 0 : index
    %c0_0 = arith.constant 0 : index
    %0 = vector.load %arg1[%c0, %c0_0] : memref<5x128xf32, #tpu.memory_space<vmem>>, vector<5x128xf32>
    %1 = arith.cmpf one, %0, %0 : vector<5x128xf32>
    %cst = arith.constant 9.99999974E-6 : f32
    %2 = vector.broadcast %cst : f32 to vector<5x128xf32>
    %3 = arith.select %1, %2, %0 : vector<5x128xi1>, vector<5x128xf32>
    %4 = arith.negf %3 : vector<5x128xf32>
    %5 = math.exp %4 : vector<5x128xf32>
    %cst_1 = arith.constant 1.000000e+00 : f32
    %6 = vector.broadcast %cst_1 : f32 to vector<5x128xf32>
    %7 = arith.addf %6, %5 : vector<5x128xf32>
    %8 = arith.divf %6, %7 : vector<5x128xf32>
    %cst_2 = arith.constant 9.99999974E-6 : f32
    %9 = vector.broadcast %cst_2 : f32 to vector<5x128xf32>
    %10 = arith.addf %9, %8 : vector<5x128xf32>
    %11 = arith.mulf %10, %10 : vector<5x128xf32>
    %12 = arith.mulf %11, %10 : vector<5x128xf32>
    %13 = vector.extract_strided_slice %12 {offsets = [0, 0], sizes = [1, 128], strides = [1, 1]} : vector<5x128xf32> to vector<1x128xf32>
    %14 = vector.extract_strided_slice %12 {offsets = [1, 0], sizes = [1, 128], strides = [1, 1]} : vector<5x128xf32> to vector<1x128xf32>
    %15 = arith.addf %13, %14 : vector<1x128xf32>
    %16 = vector.extract_strided_slice %12 {offsets = [2, 0], sizes = [1, 128], strides = [1, 1]} : vector<5x128xf32> to vector<1x128xf32>
    %17 = arith.addf %15, %16 : vector<1x128xf32>
    %18 = vector.extract_strided_slice %12 {offsets = [3, 0], sizes = [1, 128], strides = [1, 1]} : vector<5x128xf32> to vector<1x128xf32>
    %19 = arith.addf %17, %18 : vector<1x128xf32>
    %20 = vector.extract_strided_slice %12 {offsets = [4, 0], sizes = [1, 128], strides = [1, 1]} : vector<5x128xf32> to vector<1x128xf32>
    %21 = arith.addf %19, %20 : vector<1x128xf32>
    %c0_3 = arith.constant 0 : index
    %c0_4 = arith.constant 0 : index
    %22 = vector.load %arg2[%c0_3, %c0_4] : memref<1x128xf32, #tpu.memory_space<vmem>>, vector<1x128xf32>
    %23 = arith.mulf %22, %21 : vector<1x128xf32>
    %c0_i32 = arith.constant 0 : i32
    %24 = vector.broadcast %c0_i32 : i32 to vector<1x128xi32>
    %25 = arith.cmpf olt, %13, %23 : vector<1x128xf32>
    %26 = arith.extui %25 : vector<1x128xi1> to vector<1x128xi32>
    %27 = arith.addi %24, %26 : vector<1x128xi32>
    %28 = arith.cmpf olt, %15, %23 : vector<1x128xf32>
    %29 = arith.extui %28 : vector<1x128xi1> to vector<1x128xi32>
    %30 = arith.addi %27, %29 : vector<1x128xi32>
    %31 = arith.cmpf olt, %17, %23 : vector<1x128xf32>
    %32 = arith.extui %31 : vector<1x128xi1> to vector<1x128xi32>
    %33 = arith.addi %30, %32 : vector<1x128xi32>
    %34 = arith.cmpf olt, %19, %23 : vector<1x128xf32>
    %35 = arith.extui %34 : vector<1x128xi1> to vector<1x128xi32>
    %36 = arith.addi %33, %35 : vector<1x128xi32>
    %c0_5 = arith.constant 0 : index
    %c0_6 = arith.constant 0 : index
    %37 = vector.load %arg3[%c0_5, %c0_6] : memref<1x128xi32, #tpu.memory_space<vmem>>, vector<1x128xi32>
    tpu.vector_store %arg3[%c0_5, %c0_6], %36 {strides = array<i32>} : memref<1x128xi32, #tpu.memory_space<vmem>>, vector<1x128xi32>,
    return
  }
  func.func @transform_0(%arg0: i32) -> (i32, i32) {
    %c0_i32 = arith.constant 0 : i32
    %c0_i32_0 = arith.constant 0 : i32
    return %c0_i32, %arg0 : i32, i32
  }
  func.func @transform_1(%arg0: i32) -> (i32, i32) {
    %c0_i32 = arith.constant 0 : i32
    %c0_i32_0 = arith.constant 0 : i32
    return %c0_i32, %arg0 : i32, i32
  }
  func.func @transform_2(%arg0: i32) -> (i32, i32) {
    %c0_i32 = arith.constant 0 : i32
    %c0_i32_0 = arith.constant 0 : i32
    return %c0_i32, %arg0 : i32, i32
  }
}

</mosaic_0001>

<llo_original>
// kernel: tpu_custom_call.1
$region0: #{tpu_custom_call.1}
  #allocation0 [shape = 'u32[]', space=smem, size = 0x4, offset = 0x4, fixed_abs, tag = 'smem constant byte address 0x4 - core index']
  #allocation1 [shape = 'u32[144,128]{1,0:T(1,128)}', space=vmem, size = 0x12000, scoped, tag = 'internal scratch']
  %s0 = inlined_call_operand.hbm [shape: f32[5,128], index: 0, kind: input, shape index: {}]
  %s1 = inlined_call_operand.vmem [shape: f32[1,128], index: 1, kind: input, shape index: {}]
  %s2 = inlined_call_operand.hbm [shape: s32[1,128], index: 2, kind: output, shape index: {}]
  %s3 = sld [smem:[#allocation0]]
  $region22: #{tpu_custom_call.1} parent=0
    _
  %s5 = ssub.s32 1, %s3
  %s6 = scalar_select 0, %s5, %s3
  $region1: #{tpu_custom_call.1} parent=0
    #allocation2 [shape = 'u8[4096]{0}', space=vmem, size = 0x1000, scoped, tag = 'input window, operand 0, single buffered']
    #allocation3 [shape = 's32[1]{0}', space=sflag, size = 0x4, scoped, tag = 'scoped memory for tpu_custom_call.1']
    #allocation4 [shape = 's32[1]{0}', space=sflag, size = 0x4, scoped, tag = 'scoped memory for tpu_custom_call.1']
    #allocation5 [shape = 'u8[512]{0}', space=vmem, size = 0x400, scoped, tag = 'output window, operand 0, single buffered']
    %7 = vsyncpa [#allocation3], 0
    %8 = vsyncpa [#allocation4], 0
    // Predicated region
    $region2: #{tpu_custom_call.1} parent=1 // pred_check
      _
    $region3: #{tpu_custom_call.1} parent=1 // pred_check_branch
      %10 = sbr.rel (0) target = $region5
    $region4: #{tpu_custom_call.1} parent=1 // pred_region
      %s12 = ssub.s32 128, 128
      %13 = vsyncadd [#allocation3], %s12
      %s15 = sshll.u32 [#allocation2], 4
      %s16 = int_to_ptr.vmem [resolvable:$true] %s15
      %18 = dma.hbm_to_vmem [thread:$0]  %s0, 128, %s16, [#allocation3]
    $region5: #{tpu_custom_call.1} parent=1 // pred_fallthru
      _
    // Predicated region
    $region6: #{tpu_custom_call.1} parent=1 // pred_check
      _
    $region7: #{tpu_custom_call.1} parent=1 // pred_check_branch
      %20 = sbr.rel (0) target = $region9
    $region8: #{tpu_custom_call.1} parent=1 // pred_region
      _
    $region9: #{tpu_custom_call.1} parent=1 // pred_fallthru
      _
    // Predicated region
    $region10: #{tpu_custom_call.1} parent=1 // pred_check
      _
    $region11: #{tpu_custom_call.1} parent=1 // pred_check_branch
      %22 = sbr.rel (0) target = $region13
    $region12: #{tpu_custom_call.1} parent=1 // pred_region
      %23 = dma.done [#allocation3], 128
    $region13: #{tpu_custom_call.1} parent=1 // pred_fallthru
      _
    %v24 = vld [vmem:[#allocation2] sm:$0x1f]
    %vm25 = vcmp.ne.f32.partialorder %v24, %v24
    %v26 = vsel %vm25, 1e-05, %v24
    %v27 = vxor.u32 %v26, 2147483648
    %v28 = vmul.f32 %v27, 1.442695
    %v29 = vpow.pop %v28
    %v30 = vadd.f32 %v29, 1.0
    %v31 = vrcp.pop %v30
    %v32 = vmul.f32 1.0, %v31
    %v33 = vadd.f32 %v32, 1e-05
    %v34 = vmul.f32 %v33, %v33
    %v35 = vmul.f32 %v34, %v33
    %v37 = vrot.slane %v35, 1
    %v39 = vadd.f32 %v35, %v37
    %v40 = vrot.slane %v35, 2
    %v42 = vadd.f32 %v39, %v40
    %v43 = vrot.slane %v35, 3
    %v45 = vadd.f32 %v42, %v43
    %v46 = vrot.slane %v35, 4
    %v48 = vadd.f32 %v45, %v46
    %v49 = vld [vmem:[%s1] sm:$0x1]
    %v50 = vmul.f32 %v49, %v48
    %vm51 = vcmp.lt.f32.partialorder %v35, %v50
    %v52 = vsel %vm51, 1, 0
    %vm53 = vcmp.lt.f32.partialorder %v39, %v50
    %v54 = vsel %vm53, 1, 0
    %v55 = vadd.s32 %v52, %v54
    %vm56 = vcmp.lt.f32.partialorder %v42, %v50
    %v57 = vsel %vm56, 1, 0
    %v58 = vadd.s32 %v55, %v57
    %vm59 = vcmp.lt.f32.partialorder %v45, %v50
    %v60 = vsel %vm59, 1, 0
    %v61 = vadd.s32 %v58, %v60
    %62 = vst [vmem:[#allocation5] sm:$0x1] %v61
    // Predicated region
    $region14: #{tpu_custom_call.1} parent=1 // pred_check
      _
    $region15: #{tpu_custom_call.1} parent=1 // pred_check_branch
      %64 = sbr.rel (0) target = $region17
    $region16: #{tpu_custom_call.1} parent=1 // pred_region
      %s66 = ssub.s32 16, 16
      %67 = vsyncadd [#allocation4], %s66
      %s69 = sshll.u32 [#allocation5], 4
      %s70 = int_to_ptr.vmem [resolvable:$true] %s69
      %72 = dma.vmem_to_hbm [thread:$0]  %s70, 16, %s2, [#allocation4]
    $region17: #{tpu_custom_call.1} parent=1 // pred_fallthru
      _
    // Predicated region
    $region18: #{tpu_custom_call.1} parent=1 // pred_check
      _
    $region19: #{tpu_custom_call.1} parent=1 // pred_check_branch
      %74 = sbr.rel (0) target = $region21
    $region20: #{tpu_custom_call.1} parent=1 // pred_region
      %75 = dma.done [#allocation4], 16
    $region21: #{tpu_custom_call.1} parent=1 // pred_fallthru
      _
    %76 = vsyncpa [#allocation3], 1
    %77 = vsyncpa [#allocation4], 1

</llo_original>
